<compile_context>
chip_gen: v7x
topology: tpu7x:2x2x1
jax: 0.10.0
libtpu: 0.0.40
codegen_flags: <defaults>
</compile_context>

<pallas_src>
import functools

import jax
import jax.numpy as jnp
from jax.experimental import pallas as pl
from jax.experimental.pallas import tpu as pltpu


def _round_up(a: int, m: int) -> int:
    return ((a + m - 1) // m) * m


def _pilayer_kernel(x_ref, wcat_ref, bcat_ref, wf_ref, bf_ref, o_ref,
                    *, n_mod, f_in_pad):
    # x_ref:    [TB, d_in]
    # wcat_ref: [d_in, n_mod * f_in_pad]   all prev-module weights, pre-transposed
    #                                      and concatenated along the lane axis
    # bcat_ref: [1,    n_mod * f_in_pad]   concatenated biases (zero in padding)
    # wf_ref:   [f_in_pad, f_out_pad]      final FC weight, pre-transposed, padded
    # bf_ref:   [1,        f_out_pad]
    # o_ref:    [TB, f_out_pad]
    x = x_ref[...]

    # One fused MXU push for all n_mod prev-module linears; f32 accumulation.
    yw = (jnp.dot(x, wcat_ref[...], preferred_element_type=jnp.float32)
          + bcat_ref[...])

    # Product across the n_mod groups.  Slices are static and land on
    # 128-lane boundaries (f_in_pad is a multiple of 128) -> cheap, no relayout.
    y = yw[:, 0:f_in_pad]
    for n in range(1, n_mod):
        y = y * yw[:, n * f_in_pad:(n + 1) * f_in_pad]

    # Final FCLayer_lowInitWeightNorm: linear + IDENTITY activation.
    out = (jnp.dot(y.astype(wf_ref.dtype), wf_ref[...],
                   preferred_element_type=jnp.float32)
           + bf_ref[...])
    o_ref[...] = out.astype(o_ref.dtype)


def pilayer_forward(x, w_prev_t, b_prev, wf_t, bf, *, block_b=256,
                    mxu_dtype=None):
    """PILayer forward.

    x:        [B, d_in]
    w_prev_t: [n_mod, d_in, f_in]   (prev-module weights, pre-transposed)
    b_prev:   [n_mod, 1, f_in]
    wf_t:     [f_in, f_out]         (final FC weight, pre-transposed)
    bf:       [1, f_out]
    returns   [B, f_out]
    """
    B, d_in = x.shape
    n_mod, d_in2, f_in = w_prev_t.shape
    assert d_in2 == d_in
    f_out = wf_t.shape[1]
    out_dtype = x.dtype

    # ---- lane-dense padding of the feature dims (multiples of 128) ----------
    f_in_pad = _round_up(f_in, 128)
    f_out_pad = _round_up(f_out, 128)

    # Concatenate + pad prev-module weights -> [d_in, n_mod * f_in_pad].
    # Padded lanes get zero weight AND zero bias, so the group product is
    # exactly zero there; padded wf rows are zero, so the final output is
    # unaffected by padding.
    wcat = jnp.zeros((d_in, n_mod * f_in_pad), jnp.float32)
    bcat = jnp.zeros((1, n_mod * f_in_pad), jnp.float32)
    for n in range(n_mod):
        wcat = wcat.at[:, n * f_in_pad:n * f_in_pad + f_in].set(
            w_prev_t[n].astype(jnp.float32))
        bcat = bcat.at[:, n * f_in_pad:n * f_in_pad + f_in].set(
            b_prev[n].astype(jnp.float32))

    wf_pad = jnp.zeros((f_in_pad, f_out_pad), jnp.float32)
    wf_pad = wf_pad.at[:f_in, :f_out].set(wf_t.astype(jnp.float32))
    bf_pad = jnp.zeros((1, f_out_pad), jnp.float32)
    bf_pad = bf_pad.at[:, :f_out].set(bf.astype(jnp.float32))

    # Optional low-precision MXU inputs (v6e/v7x): f32 accumulation is kept
    # via preferred_element_type inside the kernel; biases stay f32.
    x_in = x
    if mxu_dtype is not None:
        x_in = x.astype(mxu_dtype)
        wcat = wcat.astype(mxu_dtype)
        wf_pad = wf_pad.astype(mxu_dtype)

    # ---- batch tiling: large tile, ragged B handled by zero padding ---------
    bb = min(block_b, _round_up(B, 8))
    bb = max(8, _round_up(bb, 8))
    b_pad = _round_up(B, bb)
    if b_pad != B:
        x_in = jnp.pad(x_in, ((0, b_pad - B), (0, 0)))
    grid_b = b_pad // bb
    # NOTE(v7x): if grid_b collapses to 1 at large B, cap block_b at B/2 so the
    # "parallel" batch axis can shard across both TensorCores.

    # ---- VMEM budget: double-buffered x/out tiles + resident weights --------
    itemsize = jnp.dtype(x_in.dtype).itemsize
    w_itemsize = jnp.dtype(wcat.dtype).itemsize
    bytes_needed = (
        2 * (bb * d_in + bb * f_out_pad) * itemsize                 # x / out tiles
        + 2 * (d_in * n_mod * f_in_pad + f_in_pad * f_out_pad) * w_itemsize
        + 2 * (n_mod * f_in_pad + f_out_pad) * 4                    # biases (f32)
    )
    vmem_limit = int(min(64 << 20, max(2 * bytes_needed + (2 << 20), 16 << 20)))

    kernel = functools.partial(_pilayer_kernel, n_mod=n_mod, f_in_pad=f_in_pad)
    out_padded = pl.pallas_call(
        kernel,
        out_shape=jax.ShapeDtypeStruct((b_pad, f_out_pad), out_dtype),
        grid_spec=pltpu.PrefetchScalarGridSpec(
            num_scalar_prefetch=0,
            grid=(grid_b,),
            in_specs=[
                pl.BlockSpec((bb, d_in), lambda i: (i, 0)),
                pl.BlockSpec((d_in, n_mod * f_in_pad), lambda i: (0, 0)),
                pl.BlockSpec((1, n_mod * f_in_pad), lambda i: (0, 0)),
                pl.BlockSpec((f_in_pad, f_out_pad), lambda i: (0, 0)),
                pl.BlockSpec((1, f_out_pad), lambda i: (0, 0)),
            ],
            out_specs=pl.BlockSpec((bb, f_out_pad), lambda i: (i, 0)),
        ),
        compiler_params=pltpu.CompilerParams(
            dimension_semantics=("parallel",),
            vmem_limit_bytes=vmem_limit,
        ),
    )(x_in, wcat, bcat, wf_pad, bf_pad)

    # Strip batch / lane padding outside the kernel.
    return out_padded[:B, :f_out]


# ----------------------------- test helpers ---------------------------------

def _xavier_uniform(key, out_f, in_f):
    bound = (6.0 / (in_f + out_f)) ** 0.5
    return jax.random.uniform(key, (out_f, in_f), jnp.float32, -bound, bound)


def _reference(x, w_prev_t, b_prev, wf_t, bf):
    y = x @ w_prev_t[0] + b_prev[0]
    for n in range(1, w_prev_t.shape[0]):
        y = y * (x @ w_prev_t[n] + b_prev[n])
    return y @ wf_t + bf


if __name__ == "__main__":
    # Small, module-consistent shapes.
    B, D_IN, F_IN, F_OUT, N_MOD = 16, 16, 32, 24, 3

    key = jax.random.PRNGKey(0)
    k_x, k_wp, k_bp, k_wf = jax.random.split(key, 4)

    x = jax.random.normal(k_x, (B, D_IN), jnp.float32)

    # prev_modules: synthesized FC layers D_IN -> F_IN (xavier W, small bias).
    wp_keys = jax.random.split(k_wp, N_MOD)
    w_prev = jnp.stack([_xavier_uniform(wp_keys[n], F_IN, D_IN)
                        for n in range(N_MOD)])                    # [N, F_IN, D_IN]
    b_prev = 0.01 * jax.random.normal(k_bp, (N_MOD, 1, F_IN), jnp.float32)
    w_prev_t = jnp.transpose(w_prev, (0, 2, 1))                    # [N, D_IN, F_IN]

    # FCLayer_lowInitWeightNorm: xavier_uniform weight, zero bias,
    # weight_norm=False (default) so weight_g / reducenorm is unused.
    wf = _xavier_uniform(k_wf, F_OUT, F_IN)                        # [F_OUT, F_IN]
    bf = jnp.zeros((1, F_OUT), jnp.float32)
    wf_t = wf.T                                                    # [F_IN, F_OUT]

    out = pilayer_forward(x, w_prev_t, b_prev, wf_t, bf, block_b=256)
    out = jax.block_until_ready(out)

    ref = _reference(x, w_prev_t, b_prev, wf_t, bf)
    assert out.shape == (B, F_OUT)
    assert jnp.allclose(out, ref, atol=1e-5, rtol=1e-5)

    # Also exercise a ragged batch to check the cdiv/padding path.
    xr = jax.random.normal(k_x, (B + 3, D_IN), jnp.float32)
    out_r = jax.block_until_ready(
        pilayer_forward(xr, w_prev_t, b_prev, wf_t, bf, block_b=256))
    ref_r = _reference(xr, w_prev_t, b_prev, wf_t, bf)
    assert out_r.shape == (B + 3, F_OUT)
    assert jnp.allclose(out_r, ref_r, atol=1e-5, rtol=1e-5)

    print("KERNEL_OK")
</pallas_src>

<mosaic_0001>
module attributes {stable_mosaic.version = 11 : i64} {
  func.func @_pilayer_kernel(%arg0: i32, %arg1: memref<16x16xf32, #tpu.memory_space<vmem>>, %arg2: memref<16x384xf32, #tpu.memory_space<vmem>>, %arg3: memref<1x384xf32, #tpu.memory_space<vmem>>, %arg4: memref<128x128xf32, #tpu.memory_space<vmem>>, %arg5: memref<1x128xf32, #tpu.memory_space<vmem>>, %arg6: memref<16x128xf32, #tpu.memory_space<vmem>>) attributes {dimension_semantics = [#tpu.dimension_semantics<parallel>], iteration_bounds = array<i64: 1>, scalar_prefetch = 0 : i64, scratch_operands = 0 : i64, tpu.core_type = #tpu.core_type<tc>, window_params = [{transform_indices = @transform_0, window_bounds = array<i64: 16, 16>}, {pipeline_mode = #tpu.pipeline_mode<synchronous>, transform_indices = @transform_1, window_bounds = array<i64: 16, 384>}, {pipeline_mode = #tpu.pipeline_mode<synchronous>, transform_indices = @transform_2, window_bounds = array<i64: 1, 384>}, {pipeline_mode = #tpu.pipeline_mode<synchronous>, transform_indices = @transform_3, window_bounds = array<i64: 128, 128>}, {pipeline_mode = #tpu.pipeline_mode<synchronous>, transform_indices = @transform_4, window_bounds = array<i64: 1, 128>}, {transform_indices = @transform_5, window_bounds = array<i64: 16, 128>}]} {
    %c0 = arith.constant 0 : index
    %c0_0 = arith.constant 0 : index
    %0 = vector.load %arg1[%c0, %c0_0] : memref<16x16xf32, #tpu.memory_space<vmem>>, vector<16x16xf32>
    %c0_1 = arith.constant 0 : index
    %c0_2 = arith.constant 0 : index
    %1 = vector.load %arg2[%c0_1, %c0_2] : memref<16x384xf32, #tpu.memory_space<vmem>>, vector<16x384xf32>
    %cst = arith.constant dense<0.000000e+00> : vector<16x384xf32>
    %2 = tpu.matmul %0, %1, %cst {dimension_numbers = #tpu.dot_dimension_numbers<[1], [0], [0], [1], [0, 0, 1, 1], [], []>} : vector<16x16xf32>, vector<16x384xf32>, vector<16x384xf32> -> vector<16x384xf32>
    %c0_3 = arith.constant 0 : index
    %c0_4 = arith.constant 0 : index
    %3 = vector.load %arg3[%c0_3, %c0_4] : memref<1x384xf32, #tpu.memory_space<vmem>>, vector<1x384xf32>
    %4 = vector.broadcast %3 : vector<1x384xf32> to vector<16x384xf32>
    %5 = arith.addf %2, %4 : vector<16x384xf32>
    %6 = vector.extract_strided_slice %5 {offsets = [0, 0], sizes = [16, 128], strides = [1, 1]} : vector<16x384xf32> to vector<16x128xf32>
    %7 = vector.extract_strided_slice %5 {offsets = [0, 128], sizes = [16, 128], strides = [1, 1]} : vector<16x384xf32> to vector<16x128xf32>
    %8 = arith.mulf %6, %7 : vector<16x128xf32>
    %9 = vector.extract_strided_slice %5 {offsets = [0, 256], sizes = [16, 128], strides = [1, 1]} : vector<16x384xf32> to vector<16x128xf32>
    %10 = arith.mulf %8, %9 : vector<16x128xf32>
    %c0_5 = arith.constant 0 : index
    %c0_6 = arith.constant 0 : index
    %11 = vector.load %arg4[%c0_5, %c0_6] : memref<128x128xf32, #tpu.memory_space<vmem>>, vector<128x128xf32>
    %cst_7 = arith.constant dense<0.000000e+00> : vector<16x128xf32>
    %12 = tpu.matmul %10, %11, %cst_7 {dimension_numbers = #tpu.dot_dimension_numbers<[1], [0], [0], [1], [0, 0, 1, 1], [], []>} : vector<16x128xf32>, vector<128x128xf32>, vector<16x128xf32> -> vector<16x128xf32>
    %c0_8 = arith.constant 0 : index
    %c0_9 = arith.constant 0 : index
    %13 = vector.load %arg5[%c0_8, %c0_9] : memref<1x128xf32, #tpu.memory_space<vmem>>, vector<1x128xf32>
    %14 = vector.broadcast %13 : vector<1x128xf32> to vector<16x128xf32>
    %15 = arith.addf %12, %14 : vector<16x128xf32>
    %c0_10 = arith.constant 0 : index
    %c0_11 = arith.constant 0 : index
    %16 = vector.load %arg6[%c0_10, %c0_11] : memref<16x128xf32, #tpu.memory_space<vmem>>, vector<16x128xf32>
    tpu.vector_store %arg6[%c0_10, %c0_11], %15 {strides = array<i32>} : memref<16x128xf32, #tpu.memory_space<vmem>>, vector<16x128xf32>,
    return
  }
  func.func @transform_0(%arg0: i32) -> (i32, i32) {
    %c0_i32 = arith.constant 0 : i32
    %c0_i32_0 = arith.constant 0 : i32
    return %arg0, %c0_i32 : i32, i32
  }
  func.func @transform_1(%arg0: i32) -> (i32, i32) {
    %c0_i32 = arith.constant 0 : i32
    %c0_i32_0 = arith.constant 0 : i32
    %c0_i32_1 = arith.constant 0 : i32
    return %c0_i32, %c0_i32_0 : i32, i32
  }
  func.func @transform_2(%arg0: i32) -> (i32, i32) {
    %c0_i32 = arith.constant 0 : i32
    %c0_i32_0 = arith.constant 0 : i32
    %c0_i32_1 = arith.constant 0 : i32
    return %c0_i32, %c0_i32_0 : i32, i32
  }
  func.func @transform_3(%arg0: i32) -> (i32, i32) {
    %c0_i32 = arith.constant 0 : i32
    %c0_i32_0 = arith.constant 0 : i32
    %c0_i32_1 = arith.constant 0 : i32
    return %c0_i32, %c0_i32_0 : i32, i32
  }
  func.func @transform_4(%arg0: i32) -> (i32, i32) {
    %c0_i32 = arith.constant 0 : i32
    %c0_i32_0 = arith.constant 0 : i32
    %c0_i32_1 = arith.constant 0 : i32
    return %c0_i32, %c0_i32_0 : i32, i32
  }
  func.func @transform_5(%arg0: i32) -> (i32, i32) {
    %c0_i32 = arith.constant 0 : i32
    %c0_i32_0 = arith.constant 0 : i32
    return %arg0, %c0_i32 : i32, i32
  }
}

</mosaic_0001>

<llo_original>
// kernel: tpu_custom_call.1
$region0: #{tpu_custom_call.1}
  #allocation0 [shape = 'u32[]', space=smem, size = 0x4, offset = 0x4, fixed_abs, tag = 'smem constant byte address 0x4 - core index']
  #allocation1 [shape = 'u32[144,128]{1,0:T(1,128)}', space=vmem, size = 0x12000, scoped, tag = 'internal scratch']
  %s0 = inlined_call_operand.hbm [shape: f32[16,16], index: 0, kind: input, shape index: {}]
  %s1 = inlined_call_operand.hbm [shape: f32[16,384], index: 1, kind: input, shape index: {}]
  %s2 = inlined_call_operand.vmem [shape: f32[1,384], index: 2, kind: input, shape index: {}]
  %s3 = inlined_call_operand.hbm [shape: f32[128,128], index: 3, kind: input, shape index: {}]
  %s4 = inlined_call_operand.vmem [shape: f32[1,128], index: 4, kind: input, shape index: {}]
  %s5 = inlined_call_operand.hbm [shape: f32[16,128], index: 5, kind: output, shape index: {}]
  %s6 = sld [smem:[#allocation0]]
  $region42: #{tpu_custom_call.1} parent=0
    _
  %s8 = ssub.s32 1, %s6
  %s9 = scalar_select 0, %s8, %s6
  $region1: #{tpu_custom_call.1} parent=0
    #allocation2 [shape = 'u8[8192]{0}', space=vmem, size = 0x2000, scoped, tag = 'input window, operand 0, single buffered']
    #allocation3 [shape = 's32[1]{0}', space=sflag, size = 0x4, scoped, tag = 'scoped memory for tpu_custom_call.1']
    #allocation4 [shape = 's32[1]{0}', space=sflag, size = 0x4, scoped, tag = 'scoped memory for tpu_custom_call.1']
    #allocation5 [shape = 'u8[24576]{0}', space=vmem, size = 0x6000, scoped, tag = 'input window, operand 1, single buffered']
    #allocation6 [shape = 's32[1]{0}', space=sflag, size = 0x4, scoped, tag = 'scoped memory for tpu_custom_call.1']
    #allocation7 [shape = 'u8[65536]{0}', space=vmem, size = 0x10000, scoped, tag = 'input window, operand 3, single buffered']
    #allocation8 [shape = 'u8[8192]{0}', space=vmem, size = 0x2000, scoped, tag = 'output window, operand 0, single buffered']
    %10 = vsyncpa [#allocation3], 0
    %11 = vsyncpa [#allocation6], 0
    %12 = vsyncpa [#allocation4], 0
    // Predicated region
    $region2: #{tpu_custom_call.1} parent=1 // pred_check
      _
    $region3: #{tpu_custom_call.1} parent=1 // pred_check_branch
      %14 = sbr.rel (0) target = $region5
    $region4: #{tpu_custom_call.1} parent=1 // pred_region
      %s16 = ssub.s32 256, 256
      %17 = vsyncadd [#allocation3], %s16
      %s18 = sshll.u32 [#allocation2], 4
      %s19 = int_to_ptr.vmem [resolvable:$true] %s18
      %24 = dma.hbm_to_vmem [thread:$0]  %s0, 256, %s19, [#allocation3], 128, 128, 8
    $region5: #{tpu_custom_call.1} parent=1 // pred_fallthru
      _
    // Predicated region
    $region6: #{tpu_custom_call.1} parent=1 // pred_check
      _
    $region7: #{tpu_custom_call.1} parent=1 // pred_check_branch
      %26 = sbr.rel (0) target = $region9
    $region8: #{tpu_custom_call.1} parent=1 // pred_region
      %s28 = ssub.s32 768, 768
      %29 = vsyncadd [#allocation6], %s28
      %s30 = sshll.u32 [#allocation5], 4
      %s31 = int_to_ptr.vmem [resolvable:$true] %s30
      %36 = dma.hbm_to_vmem [thread:$0]  %s1, 768, %s31, [#allocation6], 384, 384, 24
    $region9: #{tpu_custom_call.1} parent=1 // pred_fallthru
      _
    // Predicated region
    $region10: #{tpu_custom_call.1} parent=1 // pred_check
      _
    $region11: #{tpu_custom_call.1} parent=1 // pred_check_branch
      %38 = sbr.rel (0) target = $region13
    $region12: #{tpu_custom_call.1} parent=1 // pred_region
      _
    $region13: #{tpu_custom_call.1} parent=1 // pred_fallthru
      _
    // Predicated region
    $region14: #{tpu_custom_call.1} parent=1 // pred_check
      _
    $region15: #{tpu_custom_call.1} parent=1 // pred_check_branch
      %40 = sbr.rel (0) target = $region17
    $region16: #{tpu_custom_call.1} parent=1 // pred_region
      %s42 = ssub.s32 2048, 2048
      %43 = vsyncadd [#allocation6], %s42
      %s44 = sshll.u32 [#allocation7], 4
      %s45 = int_to_ptr.vmem [resolvable:$true] %s44
      %50 = dma.hbm_to_vmem [thread:$0]  %s3, 2048, %s45, [#allocation6], 128, 128, 8
    $region17: #{tpu_custom_call.1} parent=1 // pred_fallthru
      _
    // Predicated region
    $region18: #{tpu_custom_call.1} parent=1 // pred_check
      _
    $region19: #{tpu_custom_call.1} parent=1 // pred_check_branch
      %52 = sbr.rel (0) target = $region21
    $region20: #{tpu_custom_call.1} parent=1 // pred_region
      _
    $region21: #{tpu_custom_call.1} parent=1 // pred_fallthru
      _
    // Predicated region
    $region22: #{tpu_custom_call.1} parent=1 // pred_check
      _
    $region23: #{tpu_custom_call.1} parent=1 // pred_check_branch
      %54 = sbr.rel (0) target = $region25
    $region24: #{tpu_custom_call.1} parent=1 // pred_region
      %55 = dma.done [#allocation3], 256
    $region25: #{tpu_custom_call.1} parent=1 // pred_fallthru
      _
    // Predicated region
    $region26: #{tpu_custom_call.1} parent=1 // pred_check
      _
    $region27: #{tpu_custom_call.1} parent=1 // pred_check_branch
      %57 = sbr.rel (0) target = $region29
    $region28: #{tpu_custom_call.1} parent=1 // pred_region
      %58 = dma.done [#allocation6], 768
    $region29: #{tpu_custom_call.1} parent=1 // pred_fallthru
      _
    // Predicated region
    $region30: #{tpu_custom_call.1} parent=1 // pred_check
      _
    $region31: #{tpu_custom_call.1} parent=1 // pred_check_branch
      %60 = sbr.rel (0) target = $region33
    $region32: #{tpu_custom_call.1} parent=1 // pred_region
      %61 = dma.done [#allocation6], 2048
    $region33: #{tpu_custom_call.1} parent=1 // pred_fallthru
      _
    %v62 = vld [vmem:[#allocation2] sm:$0xff]
    %v63 = vld [vmem:[#allocation2 + $0x8] sm:$0xff]
    %v64 = vld [vmem:[#allocation5] sm:$0xff]
    %v65 = vld [vmem:[#allocation5 + $0x8] sm:$0xff]
    %v66 = vld [vmem:[#allocation5 + $0x10] sm:$0xff]
    %v67 = vld [vmem:[#allocation5 + $0x18] sm:$0xff]
    %v68 = vld [vmem:[#allocation5 + $0x20] sm:$0xff]
    %v69 = vld [vmem:[#allocation5 + $0x28] sm:$0xff]
    %v70 = vld [vmem:[%s2] sm:$0x7]
    %v72 = vlaneseq
    %v73 = vshrl.u32 %v72, 7
    %v74 = vsub.s32 0, %v73
    %v75 = vrot.slane %v70, %v74
    %v76 = vlaneseq
    %v77 = vshrl.u32 %v76, 7
    %v78 = vsub.s32 1, %v77
    %v79 = vrot.slane %v70, %v78
    %v80 = vlaneseq
    %v81 = vshrl.u32 %v80, 7
    %v82 = vsub.s32 2, %v81
    %v83 = vrot.slane %v70, %v82
    %vm87 = vcmask 130048
    %v89 = vsel %vm87, %v62, 0
    %v92 = vsel %vm87, %v63, 0
    %94 = vmatprep.subr.mxu0 %v65
    %95 = vmatpush1.msra.mxu0 %v64
    %96 = vmatprep.subr.mxu0 %v68
    %97 = vmatpush1.msra.mxu0 %v67
    %98 = vmatprep.subr.mxu0 0.0
    %99 = vmatpush1.msra.mxu0 0.0
    %100 = vmatprep.subr.mxu0 0.0
    %101 = vmatpush1.msra.mxu0 0.0
    %102 = vmatprep.subr.mxu0 0.0
    %103 = vmatpush1.msra.mxu0 0.0
    %104 = vmatprep.subr.mxu0 0.0
    %105 = vmatpush1.msra.mxu0 0.0
    %106 = vmatprep.subr.mxu0 0.0
    %107 = vmatpush1.msra.mxu0 0.0
    %108 = vmatprep.subr.mxu0 0.0
    %109 = vmatpush1.msra.mxu0 0.0
    %110 = vmatprep.subr.mxu0 0.0
    %111 = vmatpush1.msra.mxu0 0.0
    %112 = vmatprep.subr.mxu0 0.0
    %113 = vmatpush1.msra.mxu0 0.0
    %114 = vmatprep.subr.mxu0 0.0
    %115 = vmatpush1.msra.mxu0 0.0
    %116 = vmatprep.subr.mxu0 0.0
    %117 = vmatpush1.msra.mxu0 0.0
    %118 = vmatprep.subr.mxu0 0.0
    %119 = vmatpush1.msra.mxu0 0.0
    %120 = vmatprep.subr.mxu0 0.0
    %121 = vmatpush1.msra.mxu0 0.0
    %122 = vmatprep.subr.mxu0 0.0
    %123 = vmatpush1.msra.mxu0 0.0
    %124 = vmatprep.subr.mxu0 0.0
    %125 = vmatpush1.msra.mxu0 0.0
    %126 = vmatprep.subr.mxu0 0.0
    %127 = vmatpush1.msra.mxu0 0.0
    %128 = vmatprep.subr.mxu0 0.0
    %129 = vmatpush1.msra.mxu0 0.0
    %130 = vmatprep.subr.mxu0 0.0
    %131 = vmatpush1.msra.mxu0 0.0
    %132 = vmatprep.subr.mxu0 0.0
    %133 = vmatpush1.msra.mxu0 0.0
    %134 = vmatprep.subr.mxu0 0.0
    %135 = vmatpush1.msra.mxu0 0.0
    %136 = vmatprep.subr.mxu0 0.0
    %137 = vmatpush1.msra.mxu0 0.0
    %138 = vmatprep.subr.mxu0 0.0
    %139 = vmatpush1.msra.mxu0 0.0
    %140 = vmatprep.subr.mxu0 0.0
    %141 = vmatpush1.msra.mxu0 0.0
    %142 = vmatprep.subr.mxu0 0.0
    %143 = vmatpush1.msra.mxu0 0.0
    %144 = vmatprep.subr.mxu0 0.0
    %145 = vmatpush1.msra.mxu0 0.0
    %146 = vmatprep.subr.mxu0 0.0
    %147 = vmatpush1.msra.mxu0 0.0
    %148 = vmatprep.subr.mxu0 0.0
    %149 = vmatpush1.msra.mxu0 0.0
    %150 = vmatprep.subr.mxu0 0.0
    %151 = vmatpush1.msra.mxu0 0.0
    %152 = vmatprep.subr.mxu0 0.0
    %153 = vmatpush1.msra.mxu0 0.0
    %154 = vmatprep.subr.mxu0 0.0
    %155 = vmatpush1.msra.mxu0 0.0
    %156 = vmatprep.subr.mxu0 0.0
    %157 = vmatpush1.msra.mxu0 0.0
    %158 = vmatprep.mubr.f32.mxu0 0.0
    %159 = vmatmul.mubr.f32.gmra.mrb[0].mxu0 %v89
    %v160 = vpop.f32.mrb[0].mxu0
    %v161 = vadd.f32 %v75, %v160
    %v162 = vpop.f32.mrb[0].mxu0
    %v163 = vadd.f32 %v79, %v162
    %164 = vmatprep.mubr.f32.mxu0 0.0
    %165 = vmatmul.mubr.f32.gmra.mrb[0].mxu0 %v92
    %v166 = vpop.f32.mrb[0].mxu0
    %v167 = vadd.f32 %v75, %v166
    %v168 = vpop.f32.mrb[0].mxu0
    %v169 = vadd.f32 %v79, %v168
    %170 = vdwg.mxu0
    %171 = vmatprep.subr.mxu0 0.0
    %172 = vmatpush1.msra.mxu0 %v66
    %173 = vmatprep.subr.mxu0 0.0
    %174 = vmatpush1.msra.mxu0 %v69
    %175 = vmatprep.subr.mxu0 0.0
    %176 = vmatpush1.msra.mxu0 0.0
    %177 = vmatprep.subr.mxu0 0.0
    %178 = vmatpush1.msra.mxu0 0.0
    %179 = vmatprep.subr.mxu0 0.0
    %180 = vmatpush1.msra.mxu0 0.0
    %181 = vmatprep.subr.mxu0 0.0
    %182 = vmatpush1.msra.mxu0 0.0
    %183 = vmatprep.subr.mxu0 0.0
    %184 = vmatpush1.msra.mxu0 0.0
    %185 = vmatprep.subr.mxu0 0.0
    %186 = vmatpush1.msra.mxu0 0.0
    %187 = vmatprep.subr.mxu0 0.0
    %188 = vmatpush1.msra.mxu0 0.0
    %189 = vmatprep.subr.mxu0 0.0
    %190 = vmatpush1.msra.mxu0 0.0
    %191 = vmatprep.subr.mxu0 0.0
    %192 = vmatpush1.msra.mxu0 0.0
    %193 = vmatprep.subr.mxu0 0.0
    %194 = vmatpush1.msra.mxu0 0.0
    %195 = vmatprep.subr.mxu0 0.0
    %196 = vmatpush1.msra.mxu0 0.0
    %197 = vmatprep.subr.mxu0 0.0
    %198 = vmatpush1.msra.mxu0 0.0
    %199 = vmatprep.subr.mxu0 0.0
    %200 = vmatpush1.msra.mxu0 0.0
    %201 = vmatprep.subr.mxu0 0.0
    %202 = vmatpush1.msra.mxu0 0.0
    %203 = vmatprep.subr.mxu0 0.0
    %204 = vmatpush1.msra.mxu0 0.0
    %205 = vmatprep.subr.mxu0 0.0
    %206 = vmatpush1.msra.mxu0 0.0
    %207 = vmatprep.subr.mxu0 0.0
    %208 = vmatpush1.msra.mxu0 0.0
    %209 = vmatprep.subr.mxu0 0.0
    %210 = vmatpush1.msra.mxu0 0.0
    %211 = vmatprep.subr.mxu0 0.0
    %212 = vmatpush1.msra.mxu0 0.0
    %213 = vmatprep.subr.mxu0 0.0
    %214 = vmatpush1.msra.mxu0 0.0
    %215 = vmatprep.subr.mxu0 0.0
    %216 = vmatpush1.msra.mxu0 0.0
    %217 = vmatprep.subr.mxu0 0.0
    %218 = vmatpush1.msra.mxu0 0.0
    %219 = vmatprep.subr.mxu0 0.0
    %220 = vmatpush1.msra.mxu0 0.0
    %221 = vmatprep.subr.mxu0 0.0
    %222 = vmatpush1.msra.mxu0 0.0
    %223 = vmatprep.subr.mxu0 0.0
    %224 = vmatpush1.msra.mxu0 0.0
    %225 = vmatprep.subr.mxu0 0.0
    %226 = vmatpush1.msra.mxu0 0.0
    %227 = vmatprep.subr.mxu0 0.0
    %228 = vmatpush1.msra.mxu0 0.0
    %229 = vmatprep.subr.mxu0 0.0
    %230 = vmatpush1.msra.mxu0 0.0
    %231 = vmatprep.subr.mxu0 0.0
    %232 = vmatpush1.msra.mxu0 0.0
    %233 = vmatprep.subr.mxu0 0.0
    %234 = vmatpush1.msra.mxu0 0.0
    %235 = vmatprep.mubr.f32.mxu0 0.0
    %236 = vmatmul.mubr.f32.gmra.mrb[0].mxu0 %v89
    %v237 = vpop.f32.mrb[0].mxu0
    %v238 = vadd.f32 %v83, %v237
    %v239 = vpop.f32.mrb[0].mxu0
    %240 = vmatprep.mubr.f32.mxu0 0.0
    %241 = vmatmul.mubr.f32.gmra.mrb[0].mxu0 %v92
    %v242 = vpop.f32.mrb[0].mxu0
    %v243 = vadd.f32 %v83, %v242
    %v244 = vpop.f32.mrb[0].mxu0
    %245 = vdwg.mxu0
    %v246 = vmul.f32 %v161, %v163
    %v247 = vmul.f32 %v167, %v169
    %v248 = vmul.f32 %v246, %v238
    %v249 = vmul.f32 %v247, %v243
    %v250 = vld [vmem:[#allocation7] sm:$0xff]
    %v251 = vld [vmem:[#allocation7 + $0x8] sm:$0xff]
    %v252 = vld [vmem:[#allocation7 + $0x10] sm:$0xff]
    %v253 = vld [vmem:[#allocation7 + $0x18] sm:$0xff]
    %v254 = vld [vmem:[#allocation7 + $0x20] sm:$0xff]
    %v255 = vld [vmem:[#allocation7 + $0x28] sm:$0xff]
    %v256 = vld [vmem:[#allocation7 + $0x30] sm:$0xff]
    %v257 = vld [vmem:[#allocation7 + $0x38] sm:$0xff]
    %v258 = vld [vmem:[#allocation7 + $0x40] sm:$0xff]
    %v259 = vld [vmem:[#allocation7 + $0x48] sm:$0xff]
    %v260 = vld [vmem:[#allocation7 + $0x50] sm:$0xff]
    %v261 = vld [vmem:[#allocation7 + $0x58] sm:$0xff]
    %v262 = vld [vmem:[#allocation7 + $0x60] sm:$0xff]
    %v263 = vld [vmem:[#allocation7 + $0x68] sm:$0xff]
    %v264 = vld [vmem:[#allocation7 + $0x70] sm:$0xff]
    %v265 = vld [vmem:[#allocation7 + $0x78] sm:$0xff]
    %v266 = vld [vmem:[%s4] sm:$0x1]
    %v268 = vlaneseq
    %v269 = vshrl.u32 %v268, 7
    %v270 = vsub.s32 0, %v269
    %v271 = vrot.slane %v266, %v270
    %273 = vmatprep.subr.mxu0 0.0
    %274 = vmatpush1.msra.mxu0 %v250
    %275 = vmatprep.subr.mxu0 0.0
    %276 = vmatpush1.msra.mxu0 %v251
    %277 = vmatprep.subr.mxu0 0.0
    %278 = vmatpush1.msra.mxu0 %v252
    %279 = vmatprep.subr.mxu0 0.0
    %280 = vmatpush1.msra.mxu0 %v253
    %281 = vmatprep.subr.mxu0 0.0
    %282 = vmatpush1.msra.mxu0 %v254
    %283 = vmatprep.subr.mxu0 0.0
    %284 = vmatpush1.msra.mxu0 %v255
    %285 = vmatprep.subr.mxu0 0.0
    %286 = vmatpush1.msra.mxu0 %v256
    %287 = vmatprep.subr.mxu0 0.0
    %288 = vmatpush1.msra.mxu0 %v257
    %289 = vmatprep.subr.mxu0 0.0
    %290 = vmatpush1.msra.mxu0 %v258
    %291 = vmatprep.subr.mxu0 0.0
    %292 = vmatpush1.msra.mxu0 %v259
    %293 = vmatprep.subr.mxu0 0.0
    %294 = vmatpush1.msra.mxu0 %v260
    %295 = vmatprep.subr.mxu0 0.0
    %296 = vmatpush1.msra.mxu0 %v261
    %297 = vmatprep.subr.mxu0 0.0
    %298 = vmatpush1.msra.mxu0 %v262
    %299 = vmatprep.subr.mxu0 0.0
    %300 = vmatpush1.msra.mxu0 %v263
    %301 = vmatprep.subr.mxu0 0.0
    %302 = vmatpush1.msra.mxu0 %v264
    %303 = vmatprep.subr.mxu0 0.0
    %304 = vmatpush1.msra.mxu0 %v265
    %305 = vmatprep.subr.mxu0 0.0
    %306 = vmatpush1.msra.mxu0 0.0
    %307 = vmatprep.subr.mxu0 0.0
    %308 = vmatpush1.msra.mxu0 0.0
    %309 = vmatprep.subr.mxu0 0.0
    %310 = vmatpush1.msra.mxu0 0.0
    %311 = vmatprep.subr.mxu0 0.0
    %312 = vmatpush1.msra.mxu0 0.0
    %313 = vmatprep.subr.mxu0 0.0
    %314 = vmatpush1.msra.mxu0 0.0
    %315 = vmatprep.subr.mxu0 0.0
    %316 = vmatpush1.msra.mxu0 0.0
    %317 = vmatprep.subr.mxu0 0.0
    %318 = vmatpush1.msra.mxu0 0.0
    %319 = vmatprep.subr.mxu0 0.0
    %320 = vmatpush1.msra.mxu0 0.0
    %321 = vmatprep.subr.mxu0 0.0
    %322 = vmatpush1.msra.mxu0 0.0
    %323 = vmatprep.subr.mxu0 0.0
    %324 = vmatpush1.msra.mxu0 0.0
    %325 = vmatprep.subr.mxu0 0.0
    %326 = vmatpush1.msra.mxu0 0.0
    %327 = vmatprep.subr.mxu0 0.0
    %328 = vmatpush1.msra.mxu0 0.0
    %329 = vmatprep.subr.mxu0 0.0
    %330 = vmatpush1.msra.mxu0 0.0
    %331 = vmatprep.subr.mxu0 0.0
    %332 = vmatpush1.msra.mxu0 0.0
    %333 = vmatprep.subr.mxu0 0.0
    %334 = vmatpush1.msra.mxu0 0.0
    %335 = vmatprep.subr.mxu0 0.0
    %336 = vmatpush1.msra.mxu0 0.0
    %337 = vmatprep.mubr.f32.mxu0 0.0
    %338 = vmatmul.mubr.f32.gmra.mrb[0].mxu0 %v248
    %v339 = vpop.f32.mrb[0].mxu0
    %v340 = vadd.f32 %v271, %v339
    %v341 = vpop.f32.mrb[0].mxu0
    %342 = vmatprep.mubr.f32.mxu0 0.0
    %343 = vmatmul.mubr.f32.gmra.mrb[0].mxu0 %v249
    %v344 = vpop.f32.mrb[0].mxu0
    %v345 = vadd.f32 %v271, %v344
    %v346 = vpop.f32.mrb[0].mxu0
    %347 = vdwg.mxu0
    %348 = vst [vmem:[#allocation8] sm:$0xff] %v340
    %349 = vst [vmem:[#allocation8 + $0x8] sm:$0xff] %v345
    // Predicated region
    $region34: #{tpu_custom_call.1} parent=1 // pred_check
      _
    $region35: #{tpu_custom_call.1} parent=1 // pred_check_branch
      %351 = sbr.rel (0) target = $region37
    $region36: #{tpu_custom_call.1} parent=1 // pred_region
      %s353 = ssub.s32 256, 256
      %354 = vsyncadd [#allocation4], %s353
      %s355 = sshll.u32 [#allocation8], 4
      %s356 = int_to_ptr.vmem [resolvable:$true] %s355
      %361 = dma.vmem_to_hbm [thread:$0]  %s356, 256, %s5, [#allocation4], 128, 128, 8
    $region37: #{tpu_custom_call.1} parent=1 // pred_fallthru
      _
    // Predicated region
    $region38: #{tpu_custom_call.1} parent=1 // pred_check
      _
    $region39: #{tpu_custom_call.1} parent=1 // pred_check_branch
      %363 = sbr.rel (0) target = $region41
    $region40: #{tpu_custom_call.1} parent=1 // pred_region
      %364 = dma.done [#allocation4], 256
    $region41: #{tpu_custom_call.1} parent=1 // pred_fallthru
      _
    %365 = vsyncpa [#allocation3], 1
    %366 = vsyncpa [#allocation6], 1
    %367 = vsyncpa [#allocation4], 1

</llo_original>
